<compile_context>
chip_gen: v7x
topology: tpu7x:2x2x1
jax: 0.10.0
libtpu: 0.0.40
codegen_flags: <defaults>
</compile_context>

<pallas_src>
import jax
import jax.numpy as jnp
from jax import lax
from jax.experimental import pallas as pl
from jax.experimental.pallas import tpu as pltpu

# Module constants (Conv2d(2, 2, 1) + Linear(6, 2)).
C_IN, C_OUT = 2, 2
H, W = 1, 3
K = C_IN * H * W                 # 6 fused input features (conv folded in)
OUT_FEATURES = 2
LANE_TILE = 128                  # batch tile on lanes


def fuse_params(conv_w, conv_b, lin_w, lin_b):
    """One-time algebraic fold of conv(1x1) -> permute -> view -> linear.

    Hoisted out of the per-forward path; call only when parameters change.
    Returns a flat (OUT_FEATURES * (K + 1),) f32 array; the last entry of
    each row is the fused bias.
    """
    cw = conv_w.reshape(C_OUT, C_IN).astype(jnp.float32)
    # flatten index after permute(0,3,1,2): k = w*(C_OUT*H) + c*H + h
    lw_r = lin_w.reshape(OUT_FEATURES, W, C_OUT, H).astype(jnp.float32)
    w_eff = jnp.einsum('owch,ci->oihw', lw_r, cw).reshape(OUT_FEATURES, K)
    b_eff = (jnp.einsum('owch,c->o', lw_r, conv_b.astype(jnp.float32))
             + lin_b.astype(jnp.float32))
    w_fused = jnp.concatenate([w_eff, b_eff[:, None]], axis=1)   # (O, K+1)
    return w_fused.reshape(-1).astype(jnp.float32)               # (O*(K+1),)


def _affine_kernel(w_ref, x_ref, o_ref):
    # w_ref: SMEM (OUT_FEATURES*(K+1),) fused weights; last entry/row = bias
    # x_ref: VMEM (K, LANE_TILE)   batch on lanes (lane-dense)
    # o_ref: VMEM (OUT_FEATURES, LANE_TILE)
    x = x_ref[...]                                   # (K, TN) f32
    rows = []
    for o in range(OUT_FEATURES):                    # static unroll (2)
        base = o * (K + 1)
        acc = jnp.zeros((1, x.shape[1]), jnp.float32) + w_ref[base + K]  # bias
        for k in range(K):                           # static unroll (6): VPU MACs
            acc = acc + w_ref[base + k] * x[k:k + 1, :]
        rows.append(acc)
    o_ref[...] = jnp.concatenate(rows, axis=0)       # single lane-dense store


@jax.jit
def model_forward(x, w_fused):
    """Fused module forward.  x: (N, C_IN, H, W) f32 -> (N, OUT_FEATURES)."""
    assert x.dtype == jnp.float32, "kernel is pinned to f32 (v5e-safe VPU path)"
    n = x.shape[0]
    # Layout plumbing only: NCHW flatten (free) + batch onto lanes.
    x_kn = x.reshape(n, K).T                                      # (K, N)
    n_pad = pl.cdiv(n, LANE_TILE) * LANE_TILE
    if n_pad != n:
        x_kn = jnp.pad(x_kn, ((0, 0), (0, n_pad - n)))

    grid = (n_pad // LANE_TILE,)
    # Honest estimate: DMAs move (8,128)-padded f32 tiles for both x and out.
    bytes_accessed = 4 * (8 * n_pad + 8 * n_pad) + 64
    flops = 2 * n_pad * OUT_FEATURES * (K + 1)

    out_on = pl.pallas_call(
        _affine_kernel,
        out_shape=jax.ShapeDtypeStruct((OUT_FEATURES, n_pad), jnp.float32),
        grid_spec=pltpu.PrefetchScalarGridSpec(
            num_scalar_prefetch=0,
            grid=grid,
            in_specs=[
                pl.BlockSpec(memory_space=pltpu.MemorySpace.SMEM),   # fused weights
                pl.BlockSpec((K, LANE_TILE), lambda i: (0, i)),      # x tile
            ],
            out_specs=pl.BlockSpec((OUT_FEATURES, LANE_TILE), lambda i: (0, i)),
        ),
        compiler_params=pltpu.CompilerParams(
            dimension_semantics=("parallel",)),
        cost_estimate=pl.CostEstimate(
            flops=flops, transcendentals=0, bytes_accessed=bytes_accessed),
    )(w_fused, x_kn)

    # Transpose back only to preserve the module's (N, OUT) output contract;
    # drop this if the surrounding model can consume the (OUT, N) slab.
    return out_on[:, :n].T


def reference(x, conv_w, conv_b, lin_w, lin_b):
    v1 = lax.conv_general_dilated(
        x, conv_w, window_strides=(1, 1), padding='VALID',
        dimension_numbers=('NCHW', 'OIHW', 'NCHW'))
    v1 = v1 + conv_b.reshape(1, C_OUT, 1, 1)
    v2 = jnp.transpose(v1, (0, 3, 1, 2))
    v3 = v2.reshape(v2.shape[0], -1)
    return v3 @ lin_w.T + lin_b


if __name__ == "__main__":
    key = jax.random.PRNGKey(0)
    kx, k1, k2, k3, k4 = jax.random.split(key, 5)

    N = 256                                            # batched variant
    x = jax.random.normal(kx, (N, C_IN, H, W), jnp.float32)
    conv_w = jax.random.normal(k1, (C_OUT, C_IN, 1, 1), jnp.float32) * 0.5
    conv_b = jax.random.normal(k2, (C_OUT,), jnp.float32) * 0.1
    lin_w = jax.random.normal(k3, (OUT_FEATURES, C_OUT * H * W), jnp.float32) * 0.5
    lin_b = jax.random.normal(k4, (OUT_FEATURES,), jnp.float32) * 0.1

    # Hoisted: fuse parameters ONCE, not per forward call.
    w_fused = jax.block_until_ready(fuse_params(conv_w, conv_b, lin_w, lin_b))

    out = model_forward(x, w_fused)
    jax.block_until_ready(out)

    ref = reference(x, conv_w, conv_b, lin_w, lin_b)
    assert out.shape == (N, OUT_FEATURES)
    assert jnp.allclose(out, ref, atol=1e-5, rtol=1e-5), (out[:4], ref[:4])
    print("KERNEL_OK")
</pallas_src>

<mosaic_0001>
module attributes {stable_mosaic.version = 11 : i64} {
  func.func @_affine_kernel(%arg0: i32, %arg1: memref<14xf32, #tpu.memory_space<smem>>, %arg2: memref<6x128xf32, #tpu.memory_space<vmem>>, %arg3: memref<2x128xf32, #tpu.memory_space<vmem>>) attributes {dimension_semantics = [#tpu.dimension_semantics<parallel>], iteration_bounds = array<i64: 2>, scalar_prefetch = 0 : i64, scratch_operands = 0 : i64, tpu.core_type = #tpu.core_type<tc>, window_params = [{transform_indices = @transform_0, window_bounds = array<i64: 14>}, {transform_indices = @transform_1, window_bounds = array<i64: 6, 128>}, {transform_indices = @transform_2, window_bounds = array<i64: 2, 128>}]} {
    %c0 = arith.constant 0 : index
    %c0_0 = arith.constant 0 : index
    %0 = vector.load %arg2[%c0, %c0_0] : memref<6x128xf32, #tpu.memory_space<vmem>>, vector<6x128xf32>
    %cst = arith.constant 0.000000e+00 : f32
    %1 = vector.broadcast %cst : f32 to vector<1x128xf32>
    %c6 = arith.constant 6 : index
    %2 = memref.load %arg1[%c6] : memref<14xf32, #tpu.memory_space<smem>>
    %3 = vector.broadcast %2 : f32 to vector<1x128xf32>
    %4 = arith.addf %1, %3 : vector<1x128xf32>
    %c0_1 = arith.constant 0 : index
    %5 = memref.load %arg1[%c0_1] : memref<14xf32, #tpu.memory_space<smem>>
    %6 = vector.extract_strided_slice %0 {offsets = [0, 0], sizes = [1, 128], strides = [1, 1]} : vector<6x128xf32> to vector<1x128xf32>
    %7 = vector.broadcast %5 : f32 to vector<1x128xf32>
    %8 = arith.mulf %7, %6 : vector<1x128xf32>
    %9 = arith.addf %4, %8 : vector<1x128xf32>
    %c1 = arith.constant 1 : index
    %10 = memref.load %arg1[%c1] : memref<14xf32, #tpu.memory_space<smem>>
    %11 = vector.extract_strided_slice %0 {offsets = [1, 0], sizes = [1, 128], strides = [1, 1]} : vector<6x128xf32> to vector<1x128xf32>
    %12 = vector.broadcast %10 : f32 to vector<1x128xf32>
    %13 = arith.mulf %12, %11 : vector<1x128xf32>
    %14 = arith.addf %9, %13 : vector<1x128xf32>
    %c2 = arith.constant 2 : index
    %15 = memref.load %arg1[%c2] : memref<14xf32, #tpu.memory_space<smem>>
    %16 = vector.extract_strided_slice %0 {offsets = [2, 0], sizes = [1, 128], strides = [1, 1]} : vector<6x128xf32> to vector<1x128xf32>
    %17 = vector.broadcast %15 : f32 to vector<1x128xf32>
    %18 = arith.mulf %17, %16 : vector<1x128xf32>
    %19 = arith.addf %14, %18 : vector<1x128xf32>
    %c3 = arith.constant 3 : index
    %20 = memref.load %arg1[%c3] : memref<14xf32, #tpu.memory_space<smem>>
    %21 = vector.extract_strided_slice %0 {offsets = [3, 0], sizes = [1, 128], strides = [1, 1]} : vector<6x128xf32> to vector<1x128xf32>
    %22 = vector.broadcast %20 : f32 to vector<1x128xf32>
    %23 = arith.mulf %22, %21 : vector<1x128xf32>
    %24 = arith.addf %19, %23 : vector<1x128xf32>
    %c4 = arith.constant 4 : index
    %25 = memref.load %arg1[%c4] : memref<14xf32, #tpu.memory_space<smem>>
    %26 = vector.extract_strided_slice %0 {offsets = [4, 0], sizes = [1, 128], strides = [1, 1]} : vector<6x128xf32> to vector<1x128xf32>
    %27 = vector.broadcast %25 : f32 to vector<1x128xf32>
    %28 = arith.mulf %27, %26 : vector<1x128xf32>
    %29 = arith.addf %24, %28 : vector<1x128xf32>
    %c5 = arith.constant 5 : index
    %30 = memref.load %arg1[%c5] : memref<14xf32, #tpu.memory_space<smem>>
    %31 = vector.extract_strided_slice %0 {offsets = [5, 0], sizes = [1, 128], strides = [1, 1]} : vector<6x128xf32> to vector<1x128xf32>
    %32 = vector.broadcast %30 : f32 to vector<1x128xf32>
    %33 = arith.mulf %32, %31 : vector<1x128xf32>
    %34 = arith.addf %29, %33 : vector<1x128xf32>
    %cst_2 = arith.constant 0.000000e+00 : f32
    %35 = vector.broadcast %cst_2 : f32 to vector<1x128xf32>
    %c13 = arith.constant 13 : index
    %36 = memref.load %arg1[%c13] : memref<14xf32, #tpu.memory_space<smem>>
    %37 = vector.broadcast %36 : f32 to vector<1x128xf32>
    %38 = arith.addf %35, %37 : vector<1x128xf32>
    %c7 = arith.constant 7 : index
    %39 = memref.load %arg1[%c7] : memref<14xf32, #tpu.memory_space<smem>>
    %40 = vector.extract_strided_slice %0 {offsets = [0, 0], sizes = [1, 128], strides = [1, 1]} : vector<6x128xf32> to vector<1x128xf32>
    %41 = vector.broadcast %39 : f32 to vector<1x128xf32>
    %42 = arith.mulf %41, %40 : vector<1x128xf32>
    %43 = arith.addf %38, %42 : vector<1x128xf32>
    %c8 = arith.constant 8 : index
    %44 = memref.load %arg1[%c8] : memref<14xf32, #tpu.memory_space<smem>>
    %45 = vector.extract_strided_slice %0 {offsets = [1, 0], sizes = [1, 128], strides = [1, 1]} : vector<6x128xf32> to vector<1x128xf32>
    %46 = vector.broadcast %44 : f32 to vector<1x128xf32>
    %47 = arith.mulf %46, %45 : vector<1x128xf32>
    %48 = arith.addf %43, %47 : vector<1x128xf32>
    %c9 = arith.constant 9 : index
    %49 = memref.load %arg1[%c9] : memref<14xf32, #tpu.memory_space<smem>>
    %50 = vector.extract_strided_slice %0 {offsets = [2, 0], sizes = [1, 128], strides = [1, 1]} : vector<6x128xf32> to vector<1x128xf32>
    %51 = vector.broadcast %49 : f32 to vector<1x128xf32>
    %52 = arith.mulf %51, %50 : vector<1x128xf32>
    %53 = arith.addf %48, %52 : vector<1x128xf32>
    %c10 = arith.constant 10 : index
    %54 = memref.load %arg1[%c10] : memref<14xf32, #tpu.memory_space<smem>>
    %55 = vector.extract_strided_slice %0 {offsets = [3, 0], sizes = [1, 128], strides = [1, 1]} : vector<6x128xf32> to vector<1x128xf32>
    %56 = vector.broadcast %54 : f32 to vector<1x128xf32>
    %57 = arith.mulf %56, %55 : vector<1x128xf32>
    %58 = arith.addf %53, %57 : vector<1x128xf32>
    %c11 = arith.constant 11 : index
    %59 = memref.load %arg1[%c11] : memref<14xf32, #tpu.memory_space<smem>>
    %60 = vector.extract_strided_slice %0 {offsets = [4, 0], sizes = [1, 128], strides = [1, 1]} : vector<6x128xf32> to vector<1x128xf32>
    %61 = vector.broadcast %59 : f32 to vector<1x128xf32>
    %62 = arith.mulf %61, %60 : vector<1x128xf32>
    %63 = arith.addf %58, %62 : vector<1x128xf32>
    %c12 = arith.constant 12 : index
    %64 = memref.load %arg1[%c12] : memref<14xf32, #tpu.memory_space<smem>>
    %65 = vector.extract_strided_slice %0 {offsets = [5, 0], sizes = [1, 128], strides = [1, 1]} : vector<6x128xf32> to vector<1x128xf32>
    %66 = vector.broadcast %64 : f32 to vector<1x128xf32>
    %67 = arith.mulf %66, %65 : vector<1x128xf32>
    %68 = arith.addf %63, %67 : vector<1x128xf32>
    %69 = tpu.concatenate %34, %68 in 0 : vector<1x128xf32>, vector<1x128xf32> -> vector<2x128xf32>
    %c0_3 = arith.constant 0 : index
    %c0_4 = arith.constant 0 : index
    %70 = vector.load %arg3[%c0_3, %c0_4] : memref<2x128xf32, #tpu.memory_space<vmem>>, vector<2x128xf32>
    tpu.vector_store %arg3[%c0_3, %c0_4], %69 {strides = array<i32>} : memref<2x128xf32, #tpu.memory_space<vmem>>, vector<2x128xf32>,
    return
  }
  func.func @transform_0(%arg0: i32) -> i32 {
    %c0_i32 = arith.constant 0 : i32
    %c0_i32_0 = arith.constant 0 : i32
    return %c0_i32 : i32
  }
  func.func @transform_1(%arg0: i32) -> (i32, i32) {
    %c0_i32 = arith.constant 0 : i32
    %c0_i32_0 = arith.constant 0 : i32
    return %c0_i32, %arg0 : i32, i32
  }
  func.func @transform_2(%arg0: i32) -> (i32, i32) {
    %c0_i32 = arith.constant 0 : i32
    %c0_i32_0 = arith.constant 0 : i32
    return %c0_i32, %arg0 : i32, i32
  }
}

</mosaic_0001>

<llo_original>
// kernel: model_forward.1
$region0: #{model_forward.1}
  #allocation0 [shape = 'u32[]', space=smem, size = 0x4, offset = 0x4, fixed_abs, tag = 'smem constant byte address 0x4 - core index']
  #allocation1 [shape = 'u32[144,128]{1,0:T(1,128)}', space=vmem, size = 0x12000, scoped, tag = 'internal scratch']
  %s0 = inlined_call_operand.vmem [shape: f32[14], index: 0, kind: input, shape index: {}]
  %s1 = inlined_call_operand.vmem [shape: f32[6,256], index: 1, kind: input, shape index: {}]
  %s2 = inlined_call_operand.hbm [shape: f32[2,256], index: 2, kind: output, shape index: {}]
  %s3 = sld [smem:[#allocation0]]
  $region45: #{model_forward.1} parent=0
    _
  %s5 = ssub.s32 1, %s3
  %s6 = scalar_select 0, %s5, %s3
  $region1: #{model_forward.1} parent=0
    #allocation2 [shape = 'u8[512]{0}', space=smem, size = 0x200, scoped, tag = 'input window, operand 0, single buffered']
    #allocation3 [shape = 's32[2]{0}', space=sflag, size = 0x8, scoped, tag = 'scoped memory for model_forward.1']
    #allocation4 [shape = 's32[2]{0}', space=sflag, size = 0x8, scoped, tag = 'scoped memory for model_forward.1']
    #allocation5 [shape = 'u8[2048]{0}', space=vmem, size = 0x800, scoped, tag = 'output window, operand 0']
    %7 = vsyncpa [#allocation4], 0
    %8 = vsyncpa [#allocation3], 0
    %s9 = scalar_lea.sflag [#allocation3], 1
    %10 = vsyncpa %s9, 0
    loop: start=0, step=1, limit=4
    $region2: #{model_forward.1} parent=1 // loop_pre_header
      _
    $region3: #{model_forward.1} parent=1 // loop_header
      %s12 = sphi 0, %s16
      %p13 = scmp.ge.s32.totalorder %s12, 4
      %s20 = sphi 0, %s20
      %s22 = sphi 0, %s20
      %s23 = sphi 0, %s22
      %s37 = sphi 0, %s23
      %s43 = sphi 0, %s45
      %s46 = sphi 0, %s43
      %s47 = sphi 0, %s46
      %s63 = sphi 0, %s47
      %s69 = sphi 0, %s71
      %s72 = sphi 0, %s69
      %s73 = sphi 0, %s72
      %s89 = sphi 0, %s73
    $region4: #{model_forward.1} parent=1 // loop_header_branch
      %15 = sbr.rel (%p13) target = $region8
    $region5: #{model_forward.1} parent=1 // loop_body
      %s17 = ssub.s32 %s12, 1
      %s18 = ssub.s32 %s12, 2
      %s19 = sadd.s32 %s12, 1
      %s21 = sadd.s32 %s20, 1
      %p24 = scmp.eq.s32.totalorder %s12, 1
      %p25 = scmp.ne.s32.totalorder %s20, %s22
      %p26 = scmp.eq.s32.totalorder %s12, 0
      %p27 = por %p25, %p26
      %p28 = scmp.ne.s32.totalorder %s20, %s22
      %p29 = scmp.eq.s32.totalorder %s17, 1
      %p30 = por %p28, %p29
      %p31 = scmp.ne.s32.totalorder %s22, %s23
      %p32 = scmp.eq.s32.totalorder %s17, 0
      %p33 = por %p31, %p32
      %p34 = scmp.ne.s32.totalorder %s22, %s23
      %p35 = scmp.eq.s32.totalorder %s18, 1
      %p36 = por %p34, %p35
      %p38 = scmp.ne.s32.totalorder %s23, %s37
      %p39 = scmp.eq.s32.totalorder %s18, 0
      %p40 = por %p38, %p39
      %s41 = ssub.s32 %s12, %s19
      %p42 = scmp.eq.s32.totalorder %s41, 0
      %s44 = sadd.s32 %s43, 1
      %s45 = scalar_select %p42, %s43, %s44
      %p48 = pneg %p42
      %p49 = scmp.eq.s32.totalorder %s12, 1
      %p50 = por %p48, %p49
      %p51 = scmp.ne.s32.totalorder %s43, %s46
      %p52 = scmp.eq.s32.totalorder %s12, 0
      %p53 = por %p51, %p52
      %p54 = scmp.ne.s32.totalorder %s43, %s46
      %p55 = scmp.eq.s32.totalorder %s17, 1
      %p56 = por %p54, %p55
      %p57 = scmp.ne.s32.totalorder %s46, %s47
      %p58 = scmp.eq.s32.totalorder %s17, 0
      %p59 = por %p57, %p58
      %p60 = scmp.ne.s32.totalorder %s46, %s47
      %p61 = scmp.eq.s32.totalorder %s18, 1
      %p62 = por %p60, %p61
      %p64 = scmp.ne.s32.totalorder %s47, %s63
      %p65 = scmp.eq.s32.totalorder %s18, 0
      %p66 = por %p64, %p65
      %s67 = ssub.s32 %s12, %s19
      %p68 = scmp.eq.s32.totalorder %s67, 0
      %s70 = sadd.s32 %s69, 1
      %s71 = scalar_select %p68, %s69, %s70
      %p74 = pneg %p68
      %p75 = scmp.eq.s32.totalorder %s12, 1
      %p76 = por %p74, %p75
      %p77 = scmp.ne.s32.totalorder %s69, %s72
      %p78 = scmp.eq.s32.totalorder %s12, 0
      %p79 = por %p77, %p78
      %p80 = scmp.ne.s32.totalorder %s69, %s72
      %p81 = scmp.eq.s32.totalorder %s17, 1
      %p82 = por %p80, %p81
      %p83 = scmp.ne.s32.totalorder %s72, %s73
      %p84 = scmp.eq.s32.totalorder %s17, 0
      %p85 = por %p83, %p84
      %p86 = scmp.ne.s32.totalorder %s72, %s73
      %p87 = scmp.eq.s32.totalorder %s18, 1
      %p88 = por %p86, %p87
      %p90 = scmp.ne.s32.totalorder %s73, %s89
      %p91 = scmp.eq.s32.totalorder %s18, 0
      %p92 = por %p90, %p91
      %p93 = scmp.le.s32.totalorder 1, %s12
      %p94 = scmp.lt.s32.totalorder %s12, 3
      %p95 = pnand %p93, %p94
      %p96 = pneg %p95
      // Predicated region
      $region9: #{model_forward.1} parent=5 // pred_check
        _
      $region10: #{model_forward.1} parent=5 // pred_check_branch
        %98 = sbr.rel (%p95) target = $region12
      $region11: #{model_forward.1} parent=5 // pred_region
        %s99 = ssub.s32 %s12, 1
        // Predicated region
        $region13: #{model_forward.1} parent=11 // pred_check
          %p100 = pneg %p33
        $region14: #{model_forward.1} parent=11 // pred_check_branch
          %102 = sbr.rel (%p100) target = $region16
        $region15: #{model_forward.1} parent=11 // pred_region
          %s104 = ssub.s32 16, 16
          %105 = vsyncadd [#allocation4], %s104
          %s107 = sshll.u32 %s0, 4
          %s108 = int_to_ptr.vmem [resolvable:$true] %s107
          %110 = dma.vmem_to_smem %s108, 16, [#allocation2], [#allocation4]
        $region16: #{model_forward.1} parent=11 // pred_fallthru
          _
      $region12: #{model_forward.1} parent=5 // pred_fallthru
        _
      %p111 = scmp.lt.s32.totalorder %s12, 2
      // Predicated region
      $region17: #{model_forward.1} parent=5 // pred_check
        %p112 = pneg %p111
      $region18: #{model_forward.1} parent=5 // pred_check_branch
        %114 = sbr.rel (%p112) target = $region20
      $region19: #{model_forward.1} parent=5 // pred_region
        // Predicated region
        $region21: #{model_forward.1} parent=19 // pred_check
          %p115 = pneg %p53
        $region22: #{model_forward.1} parent=19 // pred_check_branch
          %117 = sbr.rel (%p115) target = $region24
        $region23: #{model_forward.1} parent=19 // pred_region
          %p118 = scmp.lt.s32.totalorder %s12, 1
          %s119 = scalar_select %p118, %s12, 1
          %s120 = smul.addr %s119, 8
          %s121 = scalar_lea.vmem %s1, %s120
        $region24: #{model_forward.1} parent=19 // pred_fallthru
          _
      $region20: #{model_forward.1} parent=5 // pred_fallthru
        _
      %p122 = scmp.le.s32.totalorder 1, %s12
      %p123 = scmp.lt.s32.totalorder %s12, 3
      %p124 = pnand %p122, %p123
      %p125 = pneg %p124
      // Predicated region
      $region25: #{model_forward.1} parent=5 // pred_check
        _
      $region26: #{model_forward.1} parent=5 // pred_check_branch
        %127 = sbr.rel (%p124) target = $region28
      $region27: #{model_forward.1} parent=5 // pred_region
        %s128 = ssub.s32 %s12, 1
        // Predicated region
        $region29: #{model_forward.1} parent=27 // pred_check
          %p129 = pneg %p33
        $region30: #{model_forward.1} parent=27 // pred_check_branch
          %131 = sbr.rel (%p129) target = $region32
        $region31: #{model_forward.1} parent=27 // pred_region
          %132 = dma.done [#allocation4], 16
        $region32: #{model_forward.1} parent=27 // pred_fallthru
          _
        %133 = sfence
        %p134 = pneg %p33
        %p135 = pneg %p30
        %p136 = scmp.lt.s32.totalorder %s17, 1
        %s137 = scalar_select %p136, %s17, 1
        %s138 = smul.addr %s137, 8
        %s139 = scalar_lea.vmem %s1, %s138
        %p140 = pneg %p59
        %p141 = pneg %p56
        %p142 = pneg %p85
        %p143 = pneg %p82
        %s144 = sand.u32 %s72, 1
        %s145 = scalar_lea.sflag [#allocation3], %s144
        %s146 = sand.u32 %s72, 1
        %s147 = smul.addr %s146, 2
        %s148 = scalar_lea.vmem [#allocation5], %s147
        %p149 = scmp.lt.s32.totalorder %s17, 1
        %s150 = scalar_select %p149, %s17, 1
        %s151 = smul.addr %s150, 8
        %s152 = scalar_lea.vmem %s1, %s151
        %v153 = vld [vmem:[%s152] sm:$0x3f]
        %s154 = sld [smem:[#allocation2 + $0x6]]
        %v155 = vstv %s154
        %v156 = vadd.f32 %v155, 0.0
        %s157 = sld [smem:[#allocation2]]
        %v158 = vstv %s157
        %v159 = vmul.f32 %v158, %v153
        %v160 = vadd.f32 %v156, %v159
        %s161 = sld [smem:[#allocation2 + $0x1]]
        %v162 = vstv %s161
        %v163 = vmul.f32 %v162, %v153
        %v165 = vrot.slane %v163, 1
        %v167 = vadd.f32 %v160, %v165
        %s168 = sld [smem:[#allocation2 + $0x2]]
        %v169 = vstv %s168
        %v170 = vmul.f32 %v169, %v153
        %v172 = vrot.slane %v170, 2
        %v174 = vadd.f32 %v167, %v172
        %s175 = sld [smem:[#allocation2 + $0x3]]
        %v176 = vstv %s175
        %v177 = vmul.f32 %v176, %v153
        %v179 = vrot.slane %v177, 3
        %v181 = vadd.f32 %v174, %v179
        %s182 = sld [smem:[#allocation2 + $0x4]]
        %v183 = vstv %s182
        %v184 = vmul.f32 %v183, %v153
        %v186 = vrot.slane %v184, 4
        %v188 = vadd.f32 %v181, %v186
        %s189 = sld [smem:[#allocation2 + $0x5]]
        %v190 = vstv %s189
        %v191 = vmul.f32 %v190, %v153
        %v193 = vrot.slane %v191, 5
        %v195 = vadd.f32 %v188, %v193
        %s196 = sld [smem:[#allocation2 + $0xd]]
        %v197 = vstv %s196
        %v198 = vadd.f32 %v197, 0.0
        %s199 = sld [smem:[#allocation2 + $0x7]]
        %v200 = vstv %s199
        %v201 = vmul.f32 %v200, %v153
        %v202 = vadd.f32 %v198, %v201
        %s203 = sld [smem:[#allocation2 + $0x8]]
        %v204 = vstv %s203
        %v205 = vmul.f32 %v204, %v153
        %v207 = vrot.slane %v205, 1
        %v209 = vadd.f32 %v202, %v207
        %s210 = sld [smem:[#allocation2 + $0x9]]
        %v211 = vstv %s210
        %v212 = vmul.f32 %v211, %v153
        %v214 = vrot.slane %v212, 2
        %v216 = vadd.f32 %v209, %v214
        %s217 = sld [smem:[#allocation2 + $0xa]]
        %v218 = vstv %s217
        %v219 = vmul.f32 %v218, %v153
        %v221 = vrot.slane %v219, 3
        %v223 = vadd.f32 %v216, %v221
        %s224 = sld [smem:[#allocation2 + $0xb]]
        %v225 = vstv %s224
        %v226 = vmul.f32 %v225, %v153
        %v228 = vrot.slane %v226, 4
        %v230 = vadd.f32 %v223, %v228
        %s231 = sld [smem:[#allocation2 + $0xc]]
        %v232 = vstv %s231
        %v233 = vmul.f32 %v232, %v153
        %v235 = vrot.slane %v233, 5
        %v237 = vadd.f32 %v230, %v235
        %v239 = vrot.slane %v237, 7
        %vm241 = vcmask 1040384
        %v242 = vsel %vm241, %v195, %v239
        %243 = vst [vmem:[%s148] sm:$0x3] %v242
        %s244 = sand.u32 %s72, 1
        %s245 = scalar_lea.sflag [#allocation3], %s244
        %s246 = sand.u32 %s72, 1
        %s247 = smul.addr %s246, 2
        %s248 = scalar_lea.vmem [#allocation5], %s247
        // Predicated region
        $region33: #{model_forward.1} parent=27 // pred_check
          %p249 = pneg %p82
        $region34: #{model_forward.1} parent=27 // pred_check_branch
          %251 = sbr.rel (%p249) target = $region36
        $region35: #{model_forward.1} parent=27 // pred_region
          %s253 = ssub.s32 32, 32
          %254 = vsyncadd %s245, %s253
          %s255 = smul.addr %s17, 32
          %s256 = scalar_lea.hbm %s2, %s255
          %s258 = sshll.u32 %s248, 4
          %s259 = int_to_ptr.vmem [resolvable:$true] %s258
          %261 = dma.vmem_to_hbm [thread:$0]  %s259, 32, %s256, %s245
        $region36: #{model_forward.1} parent=27 // pred_fallthru
          _
      $region28: #{model_forward.1} parent=5 // pred_fallthru
        _
      %p262 = scmp.le.s32.totalorder 2, %s12
      // Predicated region
      $region37: #{model_forward.1} parent=5 // pred_check
        %p263 = pneg %p262
      $region38: #{model_forward.1} parent=5 // pred_check_branch
        %265 = sbr.rel (%p263) target = $region40
      $region39: #{model_forward.1} parent=5 // pred_region
        %s266 = ssub.s32 %s12, 2
        // Predicated region
        $region41: #{model_forward.1} parent=39 // pred_check
          %p267 = pneg %p88
        $region42: #{model_forward.1} parent=39 // pred_check_branch
          %269 = sbr.rel (%p267) target = $region44
        $region43: #{model_forward.1} parent=39 // pred_region
          %s270 = sand.u32 %s73, 1
          %s271 = scalar_lea.sflag [#allocation3], %s270
          %s272 = sand.u32 %s73, 1
          %s273 = smul.addr %s272, 2
          %s274 = scalar_lea.vmem [#allocation5], %s273
          %275 = dma.done %s271, 32
        $region44: #{model_forward.1} parent=39 // pred_fallthru
          _
      $region40: #{model_forward.1} parent=5 // pred_fallthru
        _
    $region6: #{model_forward.1} parent=1 // loop_footer
      %s16 = sadd.s32 1, %s12
    $region7: #{model_forward.1} parent=1 // loop_footer_branch
      %11 = sbr.rel target = $region3
    $region8: #{model_forward.1} parent=1 // loop_exit
      _
    %276 = vsyncpa [#allocation3], 1
    %s277 = scalar_lea.sflag [#allocation3], 1
    %278 = vsyncpa %s277, 1
    %279 = vsyncpa [#allocation4], 1
    %s280 = scalar_lea.sflag [#allocation4], 1
    %281 = vsyncpa %s280, 1

</llo_original>
